<compile_context>
chip_gen: v5e
topology: v5e:2x2
jax: 0.10.0
libtpu: 0.0.40
codegen_flags: <defaults>
</compile_context>

<pallas_src>
import functools
import math

import jax
import jax.numpy as jnp
from jax.experimental import pallas as pl
from jax.experimental.pallas import tpu as pltpu


# --------------------------------------------------------------------------
# Kernel: pure element-wise compare (HBM-bandwidth bound).
# --------------------------------------------------------------------------
def _pred_kernel(logits_ref, out_ref, *, logit_threshold, cast_to_f32):
    # sigmoid(x) > t  <=>  x > log(t / (1 - t))   for t strictly in (0, 1).
    x = logits_ref[...]
    if cast_to_f32 and x.dtype != jnp.float32:
        x = x.astype(jnp.float32)
    out_ref[...] = (x > logit_threshold).astype(out_ref.dtype)


# --------------------------------------------------------------------------
# Tuning knobs.
# --------------------------------------------------------------------------
_SMALL_FASTPATH_ELEMS = 1 << 19          # below ~0.5M elems XLA fusion wins
_LANE_WIDTHS = (2048, 1024, 512, 256, 128)  # preferred lane-dense slab widths


@functools.lru_cache(maxsize=None)
def _device_kind() -> str:
    try:
        return jax.devices()[0].device_kind.lower()
    except Exception:  # pragma: no cover - CPU / interpret fallback
        return ""


def _is_v5e() -> bool:
    k = _device_kind()
    return ("v5 lite" in k) or ("v5e" in k) or ("v5litepod" in k)


def _block_budget_bytes() -> int:
    # Per-buffer block budget. Double-buffered in+out = 4x this number:
    #   v5e : 3 MiB -> 12 MiB (under the 16 MiB scoped default)
    #   v6e/v7x: 6 MiB -> 24 MiB (under the 32 MiB scoped default,
    #            well under v7x's 64 MiB physical VMEM)
    return (3 << 20) if _is_v5e() else (6 << 20)


def _choose_lane_width(total_elems: int, n: int):
    """Pick a lane-dense slab width L (multiple of 128) dividing total_elems.

    Returns None when the native (b, n) layout is already lane-dense
    (n % 128 == 0) or when no clean width exists (rare; fallback path).
    """
    if n % 128 == 0:
        return None
    for lane_w in _LANE_WIDTHS:
        if total_elems % lane_w == 0:
            return lane_w
    return None


# --------------------------------------------------------------------------
# pallas_call wrapper over a 2-D slab (rows tiled, full width per block).
# --------------------------------------------------------------------------
def _pallas_compare(x2d, logit_t, out_dtype, cast_to_f32):
    rows, cols = x2d.shape
    in_row_bytes = cols * x2d.dtype.itemsize
    out_row_bytes = cols * jnp.dtype(out_dtype).itemsize
    row_bytes = max(in_row_bytes, out_row_bytes)

    budget = _block_budget_bytes()
    block_rows = max(8, budget // max(1, row_bytes))
    block_rows = max(8, (block_rows // 8) * 8)

    # Keep >= 4 grid steps when there is enough work: overlaps input DMA,
    # compute and writeback, and lets v7x megacore shard the 'parallel' axis.
    if rows // 4 >= 8:
        block_rows = min(block_rows, max(8, ((rows // 4) // 8) * 8))
    if block_rows >= rows:
        block_rows = rows  # full-extent sublane dim is always legal

    grid = (pl.cdiv(rows, block_rows),)

    in_blk = block_rows * in_row_bytes
    out_blk = block_rows * out_row_bytes
    vmem_limit = max(2 * (in_blk + out_blk) + (4 << 20), 32 << 20)

    kernel = functools.partial(
        _pred_kernel, logit_threshold=logit_t, cast_to_f32=cast_to_f32)

    return pl.pallas_call(
        kernel,
        out_shape=jax.ShapeDtypeStruct((rows, cols), out_dtype),
        grid_spec=pltpu.PrefetchScalarGridSpec(
            num_scalar_prefetch=0,
            grid=grid,
            in_specs=[pl.BlockSpec((block_rows, cols), lambda i: (i, 0))],
            out_specs=pl.BlockSpec((block_rows, cols), lambda i: (i, 0)),
        ),
        compiler_params=pltpu.CompilerParams(
            dimension_semantics=("parallel",),
            vmem_limit_bytes=int(vmem_limit)),
    )(x2d)


# --------------------------------------------------------------------------
# Public API mirroring MLECModel.compute_pred.
# --------------------------------------------------------------------------
def compute_pred(logits: jax.Array, threshold: float = 0.5, *,
                 out_dtype=jnp.float32, force_pallas: bool = False) -> jax.Array:
    """Pallas equivalent of MLECModel.compute_pred.

    logits: (batch, num_labels) float array.
    returns: (batch, num_labels) 0/1 array in `out_dtype` (float32 default,
             matching torch `.float()`; pass bf16/int8 to cut writeback bytes).
    """
    assert logits.ndim == 2, "logits must be (batch, num_labels)"
    b, n = logits.shape

    # Degenerate thresholds: sigmoid's image is the open interval (0, 1)
    # (assumes finite logits).
    if threshold <= 0.0:
        return jnp.ones((b, n), out_dtype)
    if threshold >= 1.0:
        return jnp.zeros((b, n), out_dtype)
    logit_t = float(math.log(threshold / (1.0 - threshold)))

    total = b * n
    if total <= _SMALL_FASTPATH_ELEMS and not force_pallas:
        # Tiny inputs: a standalone kernel launch cannot beat XLA fusion here.
        return (logits.astype(jnp.float32) > logit_t).astype(out_dtype)

    # Native-dtype compare for bf16 on v6e/v7x (bf16 VALU); f32 otherwise.
    cast_to_f32 = not (logits.dtype == jnp.bfloat16 and not _is_v5e())

    lane_w = _choose_lane_width(total, n)
    if lane_w is not None:
        # Element-wise op on a row-major contiguous array: reshape is
        # metadata-only, and the slab is fully lane-dense (unmasked stores).
        x2d = logits.reshape(total // lane_w, lane_w)
        y2d = _pallas_compare(x2d, logit_t, out_dtype, cast_to_f32)
        return y2d.reshape(b, n)

    # Fallback: native (b, n) blocking. Lane-sparse only when n % 128 != 0 and
    # b*n has no multiple-of-128 divisor (rare for real workloads).
    return _pallas_compare(logits, logit_t, out_dtype, cast_to_f32)


class MLECModelPallas:
    """Mirror of MLECModel: stores alpha/beta, exposes compute_pred."""

    def __init__(self, alpha: float = 0.2, beta: float = 0.1):
        self.alpha = alpha
        self.beta = beta
        # No learned parameters are declared in the reference __init__.

    def forward(self, batch, device=None):
        # Reference forward() is `pass`; nothing to compute.
        return None

    def compute_pred(self, logits, threshold: float = 0.5):
        return compute_pred(logits, threshold)


# --------------------------------------------------------------------------
# Validation helper (torch semantics: sigmoid(logits) > threshold).
# --------------------------------------------------------------------------
def _check(y, logits, threshold):
    x = logits.astype(jnp.float32)
    ref = (jax.nn.sigmoid(x) > threshold).astype(jnp.float32)
    logit_t = math.log(threshold / (1.0 - threshold))
    # The logit-threshold rewrite is exact in real arithmetic; disagreement is
    # only possible within a few ulps of the decision boundary (wider for bf16).
    band = 1e-5 if logits.dtype == jnp.float32 else 5e-2
    near_boundary = jnp.abs(x - logit_t) < band
    assert y.shape == logits.shape
    assert bool(jnp.all((y.astype(jnp.float32) == ref) | near_boundary))


if __name__ == "__main__":
    key = jax.random.PRNGKey(0)
    k1, k2, k3 = jax.random.split(key, 3)
    model = MLECModelPallas(alpha=0.2, beta=0.1)

    # 8 examples x 11 emotion labels (typical MLEC shape) -> XLA fast path.
    logits_small = jax.random.normal(k1, (8, 11), dtype=jnp.float32) * 2.0
    y_small = jax.block_until_ready(model.compute_pred(logits_small, threshold=0.5))
    assert y_small.dtype == jnp.float32
    _check(y_small, logits_small, 0.5)

    # Narrow-label shape forced through the Pallas path: 1024*11 elements
    # flatten to a lane-dense (11, 1024) slab (no masked stores).
    logits_narrow = jax.random.normal(k2, (1024, 11), dtype=jnp.float32) * 2.0
    y_narrow = jax.block_until_ready(
        compute_pred(logits_narrow, threshold=0.5, force_pallas=True))
    _check(y_narrow, logits_narrow, 0.5)

    # Lane-dense shape through the Pallas path with a non-trivial threshold;
    # tiling yields a 4-step 'parallel' grid (DMA overlap / v7x megacore).
    logits_wide = jax.random.normal(k3, (512, 256), dtype=jnp.float32) * 2.0
    y_wide = jax.block_until_ready(
        compute_pred(logits_wide, threshold=0.7, force_pallas=True))
    _check(y_wide, logits_wide, 0.7)

    # Fallback (b, n) blocking path: total elems not divisible by 128.
    logits_odd = jax.random.normal(k1, (7, 11), dtype=jnp.float32)
    y_odd = jax.block_until_ready(
        compute_pred(logits_odd, threshold=0.5, force_pallas=True))
    _check(y_odd, logits_odd, 0.5)

    # bf16 inputs (native compare on v6e/v7x, f32 cast on v5e) + bf16 output.
    logits_bf16 = (jax.random.normal(k2, (256, 128), dtype=jnp.float32) * 2.0
                   ).astype(jnp.bfloat16)
    y_bf16 = jax.block_until_ready(
        compute_pred(logits_bf16, threshold=0.5,
                     out_dtype=jnp.bfloat16, force_pallas=True))
    assert y_bf16.dtype == jnp.bfloat16
    _check(y_bf16, logits_bf16, 0.5)

    # Degenerate thresholds.
    assert bool(jnp.all(compute_pred(logits_small, threshold=0.0) == 1.0))
    assert bool(jnp.all(compute_pred(logits_small, threshold=1.0) == 0.0))

    print("KERNEL_OK")
</pallas_src>

<mosaic_0001>
module attributes {stable_mosaic.version = 11 : i64} {
  func.func @_pred_kernel(%arg0: i32, %arg1: memref<11x1024xf32, #tpu.memory_space<vmem>>, %arg2: memref<11x1024xf32, #tpu.memory_space<vmem>>) attributes {dimension_semantics = [#tpu.dimension_semantics<parallel>], iteration_bounds = array<i64: 1>, scalar_prefetch = 0 : i64, scratch_operands = 0 : i64, tpu.core_type = #tpu.core_type<tc>, window_params = [{transform_indices = @transform_0, window_bounds = array<i64: 11, 1024>}, {transform_indices = @transform_1, window_bounds = array<i64: 11, 1024>}]} {
    %c0 = arith.constant 0 : index
    %c0_0 = arith.constant 0 : index
    %0 = vector.load %arg1[%c0, %c0_0] : memref<11x1024xf32, #tpu.memory_space<vmem>>, vector<11x1024xf32>
    %cst = arith.constant 0.000000e+00 : f32
    %1 = vector.broadcast %cst : f32 to vector<11x1024xf32>
    %2 = arith.cmpf ogt, %0, %1 : vector<11x1024xf32>
    %3 = arith.extui %2 : vector<11x1024xi1> to vector<11x1024xi32>
    %4 = arith.sitofp %3 : vector<11x1024xi32> to vector<11x1024xf32>
    %c0_1 = arith.constant 0 : index
    %c0_2 = arith.constant 0 : index
    %5 = vector.load %arg2[%c0_1, %c0_2] : memref<11x1024xf32, #tpu.memory_space<vmem>>, vector<11x1024xf32>
    tpu.vector_store %arg2[%c0_1, %c0_2], %4 {strides = array<i32>} : memref<11x1024xf32, #tpu.memory_space<vmem>>, vector<11x1024xf32>,
    return
  }
  func.func @transform_0(%arg0: i32) -> (i32, i32) {
    %c0_i32 = arith.constant 0 : i32
    %c0_i32_0 = arith.constant 0 : i32
    return %arg0, %c0_i32 : i32, i32
  }
  func.func @transform_1(%arg0: i32) -> (i32, i32) {
    %c0_i32 = arith.constant 0 : i32
    %c0_i32_0 = arith.constant 0 : i32
    return %arg0, %c0_i32 : i32, i32
  }
}

</mosaic_0001>

<llo_original>
// kernel: tpu_custom_call.1
$region0: #{tpu_custom_call.1}
  #allocation0 [shape = 'u32[]', space=smem, size = 0x4, offset = 0x4, fixed_abs, tag = 'smem constant byte address 0x4 - core index']
  #allocation1 [shape = 'u32[72,128]{1,0:T(1,128)}', space=vmem, size = 0x9000, scoped, tag = 'internal scratch']
  %s0 = inlined_call_operand.hbm [shape: f32[11,1024], index: 0, kind: input, shape index: {}]
  %s1 = inlined_call_operand.hbm [shape: f32[11,1024], index: 1, kind: output, shape index: {}]
  %s2 = sld [smem:[#allocation0]]
  $region18: #{tpu_custom_call.1} parent=0
    _
  %s4 = ssub.s32 1, %s2
  %s5 = scalar_select 0, %s4, %s2
  $region1: #{tpu_custom_call.1} parent=0
    #allocation2 [shape = 'u8[65536]{0}', space=vmem, size = 0x10000, scoped, tag = 'input window, operand 0, single buffered']
    #allocation3 [shape = 's32[1]{0}', space=sflag, size = 0x4, scoped, tag = 'scoped memory for tpu_custom_call.1']
    #allocation4 [shape = 's32[1]{0}', space=sflag, size = 0x4, scoped, tag = 'scoped memory for tpu_custom_call.1']
    #allocation5 [shape = 'u8[65536]{0}', space=vmem, size = 0x10000, scoped, tag = 'output window, operand 0, single buffered']
    %6 = vsyncpa [#allocation3], 0
    %7 = vsyncpa [#allocation4], 0
    // Predicated region
    $region2: #{tpu_custom_call.1} parent=1 // pred_check
      _
    $region3: #{tpu_custom_call.1} parent=1 // pred_check_branch
      %9 = sbr.rel (0) target = $region5
    $region4: #{tpu_custom_call.1} parent=1 // pred_region
      %11 = vsyncadd [#allocation3], 0
      %s12 = sshll.u32 %s0, 4
      %s13 = int_to_ptr.hbm [resolvable:$true] %s12
      %s14 = sshll.u32 [#allocation2], 4
      %s15 = int_to_ptr.vmem [resolvable:$true] %s14
      %20 = dma.hbm_to_vmem [thread:$0]  %s13, 2048, %s15, [#allocation3], 1024, 1024, 64
    $region5: #{tpu_custom_call.1} parent=1 // pred_fallthru
      _
    // Predicated region
    $region6: #{tpu_custom_call.1} parent=1 // pred_check
      _
    $region7: #{tpu_custom_call.1} parent=1 // pred_check_branch
      %22 = sbr.rel (0) target = $region9
    $region8: #{tpu_custom_call.1} parent=1 // pred_region
      %24 = dma.done [#allocation3], 2048
    $region9: #{tpu_custom_call.1} parent=1 // pred_fallthru
      _
    %v25 = vld [vmem:[#allocation2] sm:$0xff]
    %v26 = vld [vmem:[#allocation2 + $0x8] sm:$0xff]
    %v27 = vld [vmem:[#allocation2 + $0x10] sm:$0xff]
    %v28 = vld [vmem:[#allocation2 + $0x18] sm:$0xff]
    %v29 = vld [vmem:[#allocation2 + $0x20] sm:$0xff]
    %v30 = vld [vmem:[#allocation2 + $0x28] sm:$0xff]
    %v31 = vld [vmem:[#allocation2 + $0x30] sm:$0xff]
    %v32 = vld [vmem:[#allocation2 + $0x38] sm:$0xff]
    %v33 = vld [vmem:[#allocation2 + $0x40] sm:$0x7]
    %v34 = vld [vmem:[#allocation2 + $0x48] sm:$0x7]
    %v35 = vld [vmem:[#allocation2 + $0x50] sm:$0x7]
    %v36 = vld [vmem:[#allocation2 + $0x58] sm:$0x7]
    %v37 = vld [vmem:[#allocation2 + $0x60] sm:$0x7]
    %v38 = vld [vmem:[#allocation2 + $0x68] sm:$0x7]
    %v39 = vld [vmem:[#allocation2 + $0x70] sm:$0x7]
    %v40 = vld [vmem:[#allocation2 + $0x78] sm:$0x7]
    %vm41 = vcmp.gt.f32.partialorder %v25, 0.0
    %vm42 = vcmp.gt.f32.partialorder %v26, 0.0
    %vm43 = vcmp.gt.f32.partialorder %v27, 0.0
    %vm44 = vcmp.gt.f32.partialorder %v28, 0.0
    %vm45 = vcmp.gt.f32.partialorder %v29, 0.0
    %vm46 = vcmp.gt.f32.partialorder %v30, 0.0
    %vm47 = vcmp.gt.f32.partialorder %v31, 0.0
    %vm48 = vcmp.gt.f32.partialorder %v32, 0.0
    %vm49 = vcmp.gt.f32.partialorder %v33, 0.0
    %vm50 = vcmp.gt.f32.partialorder %v34, 0.0
    %vm51 = vcmp.gt.f32.partialorder %v35, 0.0
    %vm52 = vcmp.gt.f32.partialorder %v36, 0.0
    %vm53 = vcmp.gt.f32.partialorder %v37, 0.0
    %vm54 = vcmp.gt.f32.partialorder %v38, 0.0
    %vm55 = vcmp.gt.f32.partialorder %v39, 0.0
    %vm56 = vcmp.gt.f32.partialorder %v40, 0.0
    %v57 = vsel %vm41, 1, 0
    %v58 = vsel %vm42, 1, 0
    %v59 = vsel %vm43, 1, 0
    %v60 = vsel %vm44, 1, 0
    %v61 = vsel %vm45, 1, 0
    %v62 = vsel %vm46, 1, 0
    %v63 = vsel %vm47, 1, 0
    %v64 = vsel %vm48, 1, 0
    %v65 = vsel %vm49, 1, 0
    %v66 = vsel %vm50, 1, 0
    %v67 = vsel %vm51, 1, 0
    %v68 = vsel %vm52, 1, 0
    %v69 = vsel %vm53, 1, 0
    %v70 = vsel %vm54, 1, 0
    %v71 = vsel %vm55, 1, 0
    %v72 = vsel %vm56, 1, 0
    %v73 = vcvt.s32.f32 %v57
    %v74 = vcvt.s32.f32 %v58
    %v75 = vcvt.s32.f32 %v59
    %v76 = vcvt.s32.f32 %v60
    %v77 = vcvt.s32.f32 %v61
    %v78 = vcvt.s32.f32 %v62
    %v79 = vcvt.s32.f32 %v63
    %v80 = vcvt.s32.f32 %v64
    %v81 = vcvt.s32.f32 %v65
    %v82 = vcvt.s32.f32 %v66
    %v83 = vcvt.s32.f32 %v67
    %v84 = vcvt.s32.f32 %v68
    %v85 = vcvt.s32.f32 %v69
    %v86 = vcvt.s32.f32 %v70
    %v87 = vcvt.s32.f32 %v71
    %v88 = vcvt.s32.f32 %v72
    %89 = vst [vmem:[#allocation5] sm:$0xff] %v73
    %90 = vst [vmem:[#allocation5 + $0x8] sm:$0xff] %v74
    %91 = vst [vmem:[#allocation5 + $0x10] sm:$0xff] %v75
    %92 = vst [vmem:[#allocation5 + $0x18] sm:$0xff] %v76
    %93 = vst [vmem:[#allocation5 + $0x20] sm:$0xff] %v77
    %94 = vst [vmem:[#allocation5 + $0x28] sm:$0xff] %v78
    %95 = vst [vmem:[#allocation5 + $0x30] sm:$0xff] %v79
    %96 = vst [vmem:[#allocation5 + $0x38] sm:$0xff] %v80
    %97 = vst [vmem:[#allocation5 + $0x40] sm:$0x7] %v81
    %98 = vst [vmem:[#allocation5 + $0x48] sm:$0x7] %v82
    %99 = vst [vmem:[#allocation5 + $0x50] sm:$0x7] %v83
    %100 = vst [vmem:[#allocation5 + $0x58] sm:$0x7] %v84
    %101 = vst [vmem:[#allocation5 + $0x60] sm:$0x7] %v85
    %102 = vst [vmem:[#allocation5 + $0x68] sm:$0x7] %v86
    %103 = vst [vmem:[#allocation5 + $0x70] sm:$0x7] %v87
    %104 = vst [vmem:[#allocation5 + $0x78] sm:$0x7] %v88
    // Predicated region
    $region10: #{tpu_custom_call.1} parent=1 // pred_check
      _
    $region11: #{tpu_custom_call.1} parent=1 // pred_check_branch
      %106 = sbr.rel (0) target = $region13
    $region12: #{tpu_custom_call.1} parent=1 // pred_region
      %108 = vsyncadd [#allocation4], 0
      %s109 = sshll.u32 [#allocation5], 4
      %s110 = int_to_ptr.vmem [resolvable:$true] %s109
      %s111 = sshll.u32 %s1, 4
      %s112 = int_to_ptr.hbm [resolvable:$true] %s111
      %117 = dma.vmem_to_hbm [thread:$0]  %s110, 2048, %s112, [#allocation4], 1024, 1024, 64
    $region13: #{tpu_custom_call.1} parent=1 // pred_fallthru
      _
    // Predicated region
    $region14: #{tpu_custom_call.1} parent=1 // pred_check
      _
    $region15: #{tpu_custom_call.1} parent=1 // pred_check_branch
      %119 = sbr.rel (0) target = $region17
    $region16: #{tpu_custom_call.1} parent=1 // pred_region
      %121 = dma.done [#allocation4], 2048
    $region17: #{tpu_custom_call.1} parent=1 // pred_fallthru
      _
    %122 = vsyncpa [#allocation3], 1
    %123 = vsyncpa [#allocation4], 1

</llo_original>
